<compile_context>
chip_gen: v6e
topology: v6e:2x2x1
jax: 0.10.0
libtpu: 0.0.40
codegen_flags: <defaults>
</compile_context>

<pallas_src>
import jax
import jax.numpy as jnp
from jax import lax
from jax.experimental import pallas as pl
from jax.experimental.pallas import tpu as pltpu

_MIB = 1024 * 1024


def _make_kernel(*, margin, batch, feat_dim, block_rows, block_d,
                 tiles_per_core, needs_row_mask, needs_col_mask):
    # Python scalars only -> baked into the kernel as literals (the previous
    # version captured jnp.float32 constants, which pallas_call rejects).
    margin = float(margin)
    eps = 1e-6                        # F.pairwise_distance eps (added to diff)
    eps_norm_sq = 1e-24               # (F.normalize eps)^2; clamp on squared norm
    d_eps2 = float(feat_dim) * eps * eps
    first_masked_tile = batch // block_rows   # row tiles >= this contain rows >= batch

    def kernel(o1_ref, o2_ref, lab_ref, out_ref,
               s11_ref, s22_ref, s12_ref, r1_ref, r2_ref):
        c = pl.program_id(0)          # TensorCore (parallel)
        t = pl.program_id(1)          # row tile within this core (arbitrary)
        k = pl.program_id(2)          # feature chunk (arbitrary)

        # Per-core running loss sum lives in the (1,1,1) output block, which is
        # resident in VMEM across both arbitrary axes.
        @pl.when((t == 0) & (k == 0))
        def _():
            out_ref[...] = jnp.zeros_like(out_ref)

        # Per-row partial-reduction accumulators: reset at the start of every
        # row tile.
        @pl.when(k == 0)
        def _():
            s11_ref[...] = jnp.zeros_like(s11_ref)
            s22_ref[...] = jnp.zeros_like(s22_ref)
            s12_ref[...] = jnp.zeros_like(s12_ref)
            r1_ref[...] = jnp.zeros_like(r1_ref)
            r2_ref[...] = jnp.zeros_like(r2_ref)

        a = o1_ref[...].astype(jnp.float32)
        b = o2_ref[...].astype(jnp.float32)

        if needs_col_mask:
            # Ragged last feature chunk: discard out-of-range lanes with a
            # select (not a multiply) so stale/NaN padding data never leaks.
            col = lax.broadcasted_iota(jnp.int32, a.shape, 1) + k * block_d
            valid = col < feat_dim
            a = jnp.where(valid, a, 0.0)
            b = jnp.where(valid, b, 0.0)

        # The five separable row reductions needed by the expanded d^2.
        s11_ref[...] += jnp.sum(a * a, axis=1, keepdims=True)
        s22_ref[...] += jnp.sum(b * b, axis=1, keepdims=True)
        s12_ref[...] += jnp.sum(a * b, axis=1, keepdims=True)
        r1_ref[...] += jnp.sum(a, axis=1, keepdims=True)
        r2_ref[...] += jnp.sum(b, axis=1, keepdims=True)

        @pl.when(k == pl.num_programs(2) - 1)
        def _():
            s11 = s11_ref[...]
            s22 = s22_ref[...]
            # Row-wise F.normalize via rsqrt (EUP).  Clamping the squared norm
            # at eps^2 equals clamping the norm at eps (sqrt is monotone).
            inv1 = lax.rsqrt(jnp.maximum(s11, eps_norm_sq))
            inv2 = lax.rsqrt(jnp.maximum(s22, eps_norm_sq))
            # ||o1*inv1 - o2*inv2 + eps||^2 expanded into the row reductions;
            # no (rows, D) temporaries are materialized.
            d2 = (s11 * (inv1 * inv1) + s22 * (inv2 * inv2)
                  - 2.0 * (s12_ref[...] * (inv1 * inv2))
                  + (2.0 * eps) * (r1_ref[...] * inv1 - r2_ref[...] * inv2)
                  + d_eps2)
            d2 = jnp.maximum(d2, 0.0)         # guard cancellation when d ~ 0
            d = jnp.sqrt(d2)

            lab = lab_ref[...].astype(jnp.float32)
            clamped = jnp.maximum(margin - d, 0.0)
            per_row = (1.0 - lab) * d2 + lab * (clamped * clamped)

            logical_tile = c * tiles_per_core + t
            if needs_row_mask:
                # Full tiles pay nothing; only tiles containing rows >= batch
                # (partial last tile / clamped duplicate tiles) build the mask.
                @pl.when(logical_tile < first_masked_tile)
                def _():
                    out_ref[...] += jnp.sum(per_row)

                @pl.when(logical_tile >= first_masked_tile)
                def _():
                    row = (lax.broadcasted_iota(jnp.int32, per_row.shape, 0)
                           + logical_tile * block_rows)
                    out_ref[...] += jnp.sum(jnp.where(row < batch, per_row, 0.0))
            else:
                out_ref[...] += jnp.sum(per_row)

    return kernel


def contrastive_loss_euclidean(output1, output2, label, margin=1.0,
                               max_block_rows=4096, max_block_cols=None,
                               num_cores=2):
    """Pallas-backed contrastive loss (Euclidean). Returns a scalar f32."""
    # TODO(synk): if margin must stay a traced (learnable) value, pass it as an
    # SMEM scalar operand instead of baking it in as a compile-time constant.
    B, D = output1.shape
    label = jnp.reshape(label, (B, 1)).astype(jnp.float32)
    itemsize = jnp.dtype(output1.dtype).itemsize

    # ---- generation-aware VMEM budget -------------------------------------
    try:
        vmem_cap = int(pltpu.get_tpu_info().vmem_capacity_bytes)
    except Exception:                 # interpret mode / unknown target
        vmem_cap = 64 * _MIB          # conservative: v7x per-TensorCore VMEM
    # Scoped limit ~3/4 of physical, capped at 96 MiB (v5e/v6e: 96, v7x: 48).
    vmem_limit = int(max(32 * _MIB, min(96 * _MIB, (vmem_cap * 3) // 4)))
    budget = vmem_limit - 4 * _MIB    # headroom (semaphores, misc)

    # ---- tile sizing -------------------------------------------------------
    # Streamed inputs: 2 arrays x 2 pipeline buffers x itemsize per element,
    # plus ~4 elementwise f32 intermediates materialized in the kernel body.
    per_elem = 4 * itemsize + 16
    # Per-row fixed cost: five (rows,1) f32 scratch accumulators plus the
    # double-buffered (rows,1) label tile, each lane-padded to 128.
    per_row_fixed = (5 + 2) * 128 * 4
    # Dtype-native sublane packing: f32 -> 8, bf16 -> 16, int8/fp8 -> 32.
    row_align = 8 * max(1, 4 // itemsize)

    def pick_rows(cap):
        cap = min(cap, max_block_rows)
        if B <= cap:
            return B
        return max(row_align, (cap // row_align) * row_align)

    full_d_ok = (max_block_cols is None) or (max_block_cols >= D)
    rows_at_full_d = budget // (D * per_elem + per_row_fixed)
    if full_d_ok and rows_at_full_d >= min(row_align, B):
        block_d = D
    else:
        # Feature-dimension chunking fallback (huge D, or forced for testing):
        # lane chunks are multiples of 128.
        if max_block_cols is not None:
            block_d = max(128, (min(max_block_cols, D) // 128) * 128)
        else:
            d_cap = budget // (row_align * per_elem)
            block_d = max(128, (d_cap // 128) * 128)
        block_d = min(block_d, D)
    num_dchunks = pl.cdiv(D, block_d)
    needs_col_mask = (num_dchunks > 1) and (D % block_d != 0)

    block_rows = pick_rows(max(budget // (block_d * per_elem + per_row_fixed), 1))
    num_tiles = pl.cdiv(B, block_rows)

    # v7x: split row tiles across both TensorCores (leading "parallel" axis).
    cores = num_cores if num_tiles >= num_cores else 1
    tiles_per_core = pl.cdiv(num_tiles, cores)
    padded_tiles = cores * tiles_per_core
    needs_row_mask = (B % block_rows != 0) or (padded_tiles != num_tiles)

    if padded_tiles == num_tiles:
        def tile_idx(c, t):
            return c * tiles_per_core + t
    else:
        # Clamp out-of-range logical tiles to the last real tile; their logical
        # rows are >= B, so the in-kernel row mask zeroes their contribution.
        def tile_idx(c, t):
            return jnp.minimum(c * tiles_per_core + t, num_tiles - 1)

    kernel = _make_kernel(
        margin=float(margin), batch=B, feat_dim=D,
        block_rows=block_rows, block_d=block_d,
        tiles_per_core=tiles_per_core,
        needs_row_mask=needs_row_mask, needs_col_mask=needs_col_mask)

    cost = pl.CostEstimate(
        flops=8 * B * D,
        transcendentals=3 * B,                 # 2x rsqrt + 1x sqrt per row
        bytes_accessed=2 * B * D * itemsize + 4 * B + 4 * cores)

    partial = pl.pallas_call(
        kernel,
        out_shape=jax.ShapeDtypeStruct((cores, 1, 1), jnp.float32),
        grid=(cores, tiles_per_core, num_dchunks),
        in_specs=[
            pl.BlockSpec((block_rows, block_d), lambda c, t, k: (tile_idx(c, t), k)),
            pl.BlockSpec((block_rows, block_d), lambda c, t, k: (tile_idx(c, t), k)),
            pl.BlockSpec((block_rows, 1), lambda c, t, k: (tile_idx(c, t), 0)),
        ],
        out_specs=pl.BlockSpec((1, 1, 1), lambda c, t, k: (c, 0, 0)),
        scratch_shapes=[pltpu.VMEM((block_rows, 1), jnp.float32)] * 5,
        compiler_params=pltpu.CompilerParams(
            dimension_semantics=("parallel", "arbitrary", "arbitrary"),
            vmem_limit_bytes=vmem_limit),
        cost_estimate=cost,
    )(output1, output2, label)

    # Per-core partial sums -> mean in the wrapper (only `cores` additions
    # outside the kernel; also slightly better accumulation accuracy).
    return jnp.sum(partial) * (1.0 / B)


if __name__ == "__main__":
    key = jax.random.PRNGKey(0)
    keys = jax.random.split(key, 9)

    # Pure-JAX reference (same math as the PyTorch forward).
    def ref_loss(o1, o2, lab, margin=1.0):
        o1 = o1.astype(jnp.float32)
        o2 = o2.astype(jnp.float32)
        x1 = o1 / jnp.maximum(jnp.linalg.norm(o1, axis=1, keepdims=True), 1e-12)
        x2 = o2 / jnp.maximum(jnp.linalg.norm(o2, axis=1, keepdims=True), 1e-12)
        d = jnp.sqrt(jnp.sum((x1 - x2 + 1e-6) ** 2, axis=1, keepdims=True))
        lab = jnp.reshape(lab, (-1, 1)).astype(jnp.float32)
        return jnp.mean((1 - lab) * d ** 2
                        + lab * jnp.maximum(margin - d, 0.0) ** 2)

    # Case 1: small single-tile batch (module-scale example).
    B1, D1 = 8, 32
    o1a = jax.random.normal(keys[0], (B1, D1), dtype=jnp.float32)
    o2a = jax.random.normal(keys[1], (B1, D1), dtype=jnp.float32)
    laba = jax.random.bernoulli(keys[2], p=0.5, shape=(B1, 1)).astype(jnp.float32)
    loss1 = contrastive_loss_euclidean(o1a, o2a, laba, margin=1.0)
    jax.block_until_ready(loss1)
    exp1 = ref_loss(o1a, o2a, laba)
    assert jnp.allclose(loss1, exp1, rtol=1e-4, atol=1e-5), (loss1, exp1)

    # Case 2: multiple row tiles, odd tile count on the 2-core split (clamped
    # duplicate tile, fully masked), and ragged feature chunking (forced).
    B2, D2 = 300, 300
    o1b = jax.random.normal(keys[3], (B2, D2), dtype=jnp.float32)
    o2b = jax.random.normal(keys[4], (B2, D2), dtype=jnp.float32)
    labb = jax.random.bernoulli(keys[5], p=0.5, shape=(B2, 1)).astype(jnp.float32)
    loss2 = contrastive_loss_euclidean(o1b, o2b, labb, margin=1.0,
                                       max_block_rows=128, max_block_cols=128)
    jax.block_until_ready(loss2)
    exp2 = ref_loss(o1b, o2b, labb)
    assert jnp.allclose(loss2, exp2, rtol=1e-4, atol=1e-5), (loss2, exp2)

    # Case 3: bf16 inputs (16-row sublane alignment) with a partial last tile.
    B3, D3 = 200, 256
    o1c = jax.random.normal(keys[6], (B3, D3), dtype=jnp.bfloat16)
    o2c = jax.random.normal(keys[7], (B3, D3), dtype=jnp.bfloat16)
    labc = jax.random.bernoulli(keys[8], p=0.5, shape=(B3, 1)).astype(jnp.float32)
    loss3 = contrastive_loss_euclidean(o1c, o2c, labc, margin=1.0,
                                       max_block_rows=64)
    jax.block_until_ready(loss3)
    exp3 = ref_loss(o1c, o2c, labc)
    assert jnp.allclose(loss3, exp3, rtol=1e-4, atol=1e-5), (loss3, exp3)

    print("KERNEL_OK")
</pallas_src>

<mosaic_0001>
module attributes {stable_mosaic.version = 11 : i64} {
  func.func @kernel(%arg0: i32, %arg1: i32, %arg2: i32, %arg3: memref<8x32xf32, #tpu.memory_space<vmem>>, %arg4: memref<8x32xf32, #tpu.memory_space<vmem>>, %arg5: memref<8x1xf32, #tpu.memory_space<vmem>>, %arg6: memref<1x1x1xf32, #tpu.memory_space<vmem>>, %arg7: memref<8x1xf32, #tpu.memory_space<vmem>>, %arg8: memref<8x1xf32, #tpu.memory_space<vmem>>, %arg9: memref<8x1xf32, #tpu.memory_space<vmem>>, %arg10: memref<8x1xf32, #tpu.memory_space<vmem>>, %arg11: memref<8x1xf32, #tpu.memory_space<vmem>>) attributes {dimension_semantics = [#tpu.dimension_semantics<parallel>, #tpu.dimension_semantics<arbitrary>, #tpu.dimension_semantics<arbitrary>], iteration_bounds = array<i64: 1, 1, 1>, scalar_prefetch = 0 : i64, scratch_operands = 5 : i64, tpu.core_type = #tpu.core_type<tc>, window_params = [{transform_indices = @transform_0, window_bounds = array<i64: 8, 32>}, {transform_indices = @transform_1, window_bounds = array<i64: 8, 32>}, {transform_indices = @transform_2, window_bounds = array<i64: 8, 1>}, {transform_indices = @transform_3, window_bounds = array<i64: 1, 1, 1>}]} {
    %c0_i32 = arith.constant 0 : i32
    %0 = arith.cmpi eq, %arg1, %c0_i32 : i32
    %c0_i32_0 = arith.constant 0 : i32
    %1 = arith.cmpi eq, %arg2, %c0_i32_0 : i32
    %2 = arith.andi %0, %1 : i1
    %3 = arith.extui %2 : i1 to i32
    %c0_i32_1 = arith.constant 0 : i32
    %4 = arith.cmpi ne, %3, %c0_i32_1 : i32
    scf.if %4 {
      %cst_33 = arith.constant 0.000000e+00 : f32
      %41 = vector.broadcast %cst_33 : f32 to vector<1x1x1xf32>
      %c0_34 = arith.constant 0 : index
      %c0_35 = arith.constant 0 : index
      %c0_36 = arith.constant 0 : index
      %42 = vector.load %arg6[%c0_34, %c0_35, %c0_36] : memref<1x1x1xf32, #tpu.memory_space<vmem>>, vector<1x1x1xf32>
      tpu.vector_store %arg6[%c0_34, %c0_35, %c0_36], %41 {strides = array<i32>} : memref<1x1x1xf32, #tpu.memory_space<vmem>>, vector<1x1x1xf32>,
    } else {
    }
    %c0_i32_2 = arith.constant 0 : i32
    %5 = arith.cmpi eq, %arg2, %c0_i32_2 : i32
    %6 = arith.extui %5 : i1 to i32
    %c0_i32_3 = arith.constant 0 : i32
    %7 = arith.cmpi ne, %6, %c0_i32_3 : i32
    scf.if %7 {
      %cst_33 = arith.constant 0.000000e+00 : f32
      %41 = vector.broadcast %cst_33 : f32 to vector<8x1xf32>
      %c0_34 = arith.constant 0 : index
      %c0_35 = arith.constant 0 : index
      %42 = vector.load %arg7[%c0_34, %c0_35] : memref<8x1xf32, #tpu.memory_space<vmem>>, vector<8x1xf32>
      tpu.vector_store %arg7[%c0_34, %c0_35], %41 {strides = array<i32>} : memref<8x1xf32, #tpu.memory_space<vmem>>, vector<8x1xf32>,
      %cst_36 = arith.constant 0.000000e+00 : f32
      %43 = vector.broadcast %cst_36 : f32 to vector<8x1xf32>
      %c0_37 = arith.constant 0 : index
      %c0_38 = arith.constant 0 : index
      %44 = vector.load %arg8[%c0_37, %c0_38] : memref<8x1xf32, #tpu.memory_space<vmem>>, vector<8x1xf32>
      tpu.vector_store %arg8[%c0_37, %c0_38], %43 {strides = array<i32>} : memref<8x1xf32, #tpu.memory_space<vmem>>, vector<8x1xf32>,
      %cst_39 = arith.constant 0.000000e+00 : f32
      %45 = vector.broadcast %cst_39 : f32 to vector<8x1xf32>
      %c0_40 = arith.constant 0 : index
      %c0_41 = arith.constant 0 : index
      %46 = vector.load %arg9[%c0_40, %c0_41] : memref<8x1xf32, #tpu.memory_space<vmem>>, vector<8x1xf32>
      tpu.vector_store %arg9[%c0_40, %c0_41], %45 {strides = array<i32>} : memref<8x1xf32, #tpu.memory_space<vmem>>, vector<8x1xf32>,
      %cst_42 = arith.constant 0.000000e+00 : f32
      %47 = vector.broadcast %cst_42 : f32 to vector<8x1xf32>
      %c0_43 = arith.constant 0 : index
      %c0_44 = arith.constant 0 : index
      %48 = vector.load %arg10[%c0_43, %c0_44] : memref<8x1xf32, #tpu.memory_space<vmem>>, vector<8x1xf32>
      tpu.vector_store %arg10[%c0_43, %c0_44], %47 {strides = array<i32>} : memref<8x1xf32, #tpu.memory_space<vmem>>, vector<8x1xf32>,
      %cst_45 = arith.constant 0.000000e+00 : f32
      %49 = vector.broadcast %cst_45 : f32 to vector<8x1xf32>
      %c0_46 = arith.constant 0 : index
      %c0_47 = arith.constant 0 : index
      %50 = vector.load %arg11[%c0_46, %c0_47] : memref<8x1xf32, #tpu.memory_space<vmem>>, vector<8x1xf32>
      tpu.vector_store %arg11[%c0_46, %c0_47], %49 {strides = array<i32>} : memref<8x1xf32, #tpu.memory_space<vmem>>, vector<8x1xf32>,
    } else {
    }
    %c0 = arith.constant 0 : index
    %c0_4 = arith.constant 0 : index
    %8 = vector.load %arg3[%c0, %c0_4] : memref<8x32xf32, #tpu.memory_space<vmem>>, vector<8x32xf32>
    %c0_5 = arith.constant 0 : index
    %c0_6 = arith.constant 0 : index
    %9 = vector.load %arg4[%c0_5, %c0_6] : memref<8x32xf32, #tpu.memory_space<vmem>>, vector<8x32xf32>
    %c0_7 = arith.constant 0 : index
    %c0_8 = arith.constant 0 : index
    %10 = vector.load %arg7[%c0_7, %c0_8] : memref<8x1xf32, #tpu.memory_space<vmem>>, vector<8x1xf32>
    %11 = arith.mulf %8, %8 : vector<8x32xf32>
    %cst = arith.constant dense<0.000000e+00> : vector<8xf32>
    %12 = vector.multi_reduction <add>, %11, %cst [1] : vector<8x32xf32> to vector<8xf32>
    %13 = vector.shape_cast %12 : vector<8xf32> to vector<8x1xf32>
    %14 = arith.addf %10, %13 : vector<8x1xf32>
    %c0_9 = arith.constant 0 : index
    %c0_10 = arith.constant 0 : index
    %15 = vector.load %arg7[%c0_9, %c0_10] : memref<8x1xf32, #tpu.memory_space<vmem>>, vector<8x1xf32>
    tpu.vector_store %arg7[%c0_9, %c0_10], %14 {strides = array<i32>} : memref<8x1xf32, #tpu.memory_space<vmem>>, vector<8x1xf32>,
    %c0_11 = arith.constant 0 : index
    %c0_12 = arith.constant 0 : index
    %16 = vector.load %arg8[%c0_11, %c0_12] : memref<8x1xf32, #tpu.memory_space<vmem>>, vector<8x1xf32>
    %17 = arith.mulf %9, %9 : vector<8x32xf32>
    %cst_13 = arith.constant dense<0.000000e+00> : vector<8xf32>
    %18 = vector.multi_reduction <add>, %17, %cst_13 [1] : vector<8x32xf32> to vector<8xf32>
    %19 = vector.shape_cast %18 : vector<8xf32> to vector<8x1xf32>
    %20 = arith.addf %16, %19 : vector<8x1xf32>
    %c0_14 = arith.constant 0 : index
    %c0_15 = arith.constant 0 : index
    %21 = vector.load %arg8[%c0_14, %c0_15] : memref<8x1xf32, #tpu.memory_space<vmem>>, vector<8x1xf32>
    tpu.vector_store %arg8[%c0_14, %c0_15], %20 {strides = array<i32>} : memref<8x1xf32, #tpu.memory_space<vmem>>, vector<8x1xf32>,
    %c0_16 = arith.constant 0 : index
    %c0_17 = arith.constant 0 : index
    %22 = vector.load %arg9[%c0_16, %c0_17] : memref<8x1xf32, #tpu.memory_space<vmem>>, vector<8x1xf32>
    %23 = arith.mulf %8, %9 : vector<8x32xf32>
    %cst_18 = arith.constant dense<0.000000e+00> : vector<8xf32>
    %24 = vector.multi_reduction <add>, %23, %cst_18 [1] : vector<8x32xf32> to vector<8xf32>
    %25 = vector.shape_cast %24 : vector<8xf32> to vector<8x1xf32>
    %26 = arith.addf %22, %25 : vector<8x1xf32>
    %c0_19 = arith.constant 0 : index
    %c0_20 = arith.constant 0 : index
    %27 = vector.load %arg9[%c0_19, %c0_20] : memref<8x1xf32, #tpu.memory_space<vmem>>, vector<8x1xf32>
    tpu.vector_store %arg9[%c0_19, %c0_20], %26 {strides = array<i32>} : memref<8x1xf32, #tpu.memory_space<vmem>>, vector<8x1xf32>,
    %c0_21 = arith.constant 0 : index
    %c0_22 = arith.constant 0 : index
    %28 = vector.load %arg10[%c0_21, %c0_22] : memref<8x1xf32, #tpu.memory_space<vmem>>, vector<8x1xf32>
    %cst_23 = arith.constant dense<0.000000e+00> : vector<8xf32>
    %29 = vector.multi_reduction <add>, %8, %cst_23 [1] : vector<8x32xf32> to vector<8xf32>
    %30 = vector.shape_cast %29 : vector<8xf32> to vector<8x1xf32>
    %31 = arith.addf %28, %30 : vector<8x1xf32>
    %c0_24 = arith.constant 0 : index
    %c0_25 = arith.constant 0 : index
    %32 = vector.load %arg10[%c0_24, %c0_25] : memref<8x1xf32, #tpu.memory_space<vmem>>, vector<8x1xf32>
    tpu.vector_store %arg10[%c0_24, %c0_25], %31 {strides = array<i32>} : memref<8x1xf32, #tpu.memory_space<vmem>>, vector<8x1xf32>,
    %c0_26 = arith.constant 0 : index
    %c0_27 = arith.constant 0 : index
    %33 = vector.load %arg11[%c0_26, %c0_27] : memref<8x1xf32, #tpu.memory_space<vmem>>, vector<8x1xf32>
    %cst_28 = arith.constant dense<0.000000e+00> : vector<8xf32>
    %34 = vector.multi_reduction <add>, %9, %cst_28 [1] : vector<8x32xf32> to vector<8xf32>
    %35 = vector.shape_cast %34 : vector<8xf32> to vector<8x1xf32>
    %36 = arith.addf %33, %35 : vector<8x1xf32>
    %c0_29 = arith.constant 0 : index
    %c0_30 = arith.constant 0 : index
    %37 = vector.load %arg11[%c0_29, %c0_30] : memref<8x1xf32, #tpu.memory_space<vmem>>, vector<8x1xf32>
    tpu.vector_store %arg11[%c0_29, %c0_30], %36 {strides = array<i32>} : memref<8x1xf32, #tpu.memory_space<vmem>>, vector<8x1xf32>,
    %c0_i32_31 = arith.constant 0 : i32
    %38 = arith.cmpi eq, %arg2, %c0_i32_31 : i32
    %39 = arith.extui %38 : i1 to i32
    %c0_i32_32 = arith.constant 0 : i32
    %40 = arith.cmpi ne, %39, %c0_i32_32 : i32
    scf.if %40 {
      %c0_33 = arith.constant 0 : index
      %c0_34 = arith.constant 0 : index
      %41 = vector.load %arg7[%c0_33, %c0_34] : memref<8x1xf32, #tpu.memory_space<vmem>>, vector<8x1xf32>
      %c0_35 = arith.constant 0 : index
      %c0_36 = arith.constant 0 : index
      %42 = vector.load %arg8[%c0_35, %c0_36] : memref<8x1xf32, #tpu.memory_space<vmem>>, vector<8x1xf32>
      %cst_37 = arith.constant 1.000000e-24 : f32
      %43 = vector.broadcast %cst_37 : f32 to vector<8x1xf32>
      %44 = arith.maximumf %41, %43 : vector<8x1xf32>
      %45 = math.rsqrt %44 : vector<8x1xf32>
      %cst_38 = arith.constant 1.000000e-24 : f32
      %46 = vector.broadcast %cst_38 : f32 to vector<8x1xf32>
      %47 = arith.maximumf %42, %46 : vector<8x1xf32>
      %48 = math.rsqrt %47 : vector<8x1xf32>
      %49 = arith.mulf %45, %45 : vector<8x1xf32>
      %50 = arith.mulf %41, %49 : vector<8x1xf32>
      %51 = arith.mulf %48, %48 : vector<8x1xf32>
      %52 = arith.mulf %42, %51 : vector<8x1xf32>
      %53 = arith.addf %50, %52 : vector<8x1xf32>
      %c0_39 = arith.constant 0 : index
      %c0_40 = arith.constant 0 : index
      %54 = vector.load %arg9[%c0_39, %c0_40] : memref<8x1xf32, #tpu.memory_space<vmem>>, vector<8x1xf32>
      %55 = arith.mulf %45, %48 : vector<8x1xf32>
      %56 = arith.mulf %54, %55 : vector<8x1xf32>
      %cst_41 = arith.constant 2.000000e+00 : f32
      %57 = vector.broadcast %cst_41 : f32 to vector<8x1xf32>
      %58 = arith.mulf %57, %56 : vector<8x1xf32>
      %59 = arith.subf %53, %58 : vector<8x1xf32>
      %c0_42 = arith.constant 0 : index
      %c0_43 = arith.constant 0 : index
      %60 = vector.load %arg10[%c0_42, %c0_43] : memref<8x1xf32, #tpu.memory_space<vmem>>, vector<8x1xf32>
      %61 = arith.mulf %60, %45 : vector<8x1xf32>
      %c0_44 = arith.constant 0 : index
      %c0_45 = arith.constant 0 : index
      %62 = vector.load %arg11[%c0_44, %c0_45] : memref<8x1xf32, #tpu.memory_space<vmem>>, vector<8x1xf32>
      %63 = arith.mulf %62, %48 : vector<8x1xf32>
      %64 = arith.subf %61, %63 : vector<8x1xf32>
      %cst_46 = arith.constant 2.000000e-06 : f32
      %65 = vector.broadcast %cst_46 : f32 to vector<8x1xf32>
      %66 = arith.mulf %65, %64 : vector<8x1xf32>
      %67 = arith.addf %59, %66 : vector<8x1xf32>
      %cst_47 = arith.constant 3.200000e-11 : f32
      %68 = vector.broadcast %cst_47 : f32 to vector<8x1xf32>
      %69 = arith.addf %67, %68 : vector<8x1xf32>
      %cst_48 = arith.constant 0.000000e+00 : f32
      %70 = vector.broadcast %cst_48 : f32 to vector<8x1xf32>
      %71 = arith.maximumf %69, %70 : vector<8x1xf32>
      %72 = math.sqrt %71 : vector<8x1xf32>
      %c0_49 = arith.constant 0 : index
      %c0_50 = arith.constant 0 : index
      %73 = vector.load %arg5[%c0_49, %c0_50] : memref<8x1xf32, #tpu.memory_space<vmem>>, vector<8x1xf32>
      %cst_51 = arith.constant 1.000000e+00 : f32
      %74 = vector.broadcast %cst_51 : f32 to vector<8x1xf32>
      %75 = arith.subf %74, %72 : vector<8x1xf32>
      %cst_52 = arith.constant 0.000000e+00 : f32
      %76 = vector.broadcast %cst_52 : f32 to vector<8x1xf32>
      %77 = arith.maximumf %75, %76 : vector<8x1xf32>
      %cst_53 = arith.constant 1.000000e+00 : f32
      %78 = vector.broadcast %cst_53 : f32 to vector<8x1xf32>
      %79 = arith.subf %78, %73 : vector<8x1xf32>
      %80 = arith.mulf %79, %71 : vector<8x1xf32>
      %81 = arith.mulf %77, %77 : vector<8x1xf32>
      %82 = arith.mulf %73, %81 : vector<8x1xf32>
      %83 = arith.addf %80, %82 : vector<8x1xf32>
      %c0_54 = arith.constant 0 : index
      %c0_55 = arith.constant 0 : index
      %c0_56 = arith.constant 0 : index
      %84 = vector.load %arg6[%c0_54, %c0_55, %c0_56] : memref<1x1x1xf32, #tpu.memory_space<vmem>>, vector<1x1x1xf32>
      %85 = vector.shape_cast %83 : vector<8x1xf32> to vector<1x8x1xf32>
      %cst_57 = arith.constant dense<0.000000e+00> : vector<1xf32>
      %86 = vector.multi_reduction <add>, %85, %cst_57 [1, 2] : vector<1x8x1xf32> to vector<1xf32>
      %87 = vector.shape_cast %86 : vector<1xf32> to vector<1x1x1xf32>
      %88 = vector.extract %87[0, 0, 0] : f32 from vector<1x1x1xf32>
      %89 = vector.broadcast %88 : f32 to vector<1x1x1xf32>
      %90 = arith.addf %84, %89 : vector<1x1x1xf32>
      %c0_58 = arith.constant 0 : index
      %c0_59 = arith.constant 0 : index
      %c0_60 = arith.constant 0 : index
      %91 = vector.load %arg6[%c0_58, %c0_59, %c0_60] : memref<1x1x1xf32, #tpu.memory_space<vmem>>, vector<1x1x1xf32>
      tpu.vector_store %arg6[%c0_58, %c0_59, %c0_60], %90 {strides = array<i32>} : memref<1x1x1xf32, #tpu.memory_space<vmem>>, vector<1x1x1xf32>,
    } else {
    }
    return
  }
  func.func @transform_0(%arg0: i32, %arg1: i32, %arg2: i32) -> (i32, i32) {
    %c1_i32 = arith.constant 1 : i32
    %0 = arith.muli %arg0, %c1_i32 : i32
    %1 = arith.addi %0, %arg1 : i32
    %c0_i32 = arith.constant 0 : i32
    return %1, %arg2 : i32, i32
  }
  func.func @transform_1(%arg0: i32, %arg1: i32, %arg2: i32) -> (i32, i32) {
    %c1_i32 = arith.constant 1 : i32
    %0 = arith.muli %arg0, %c1_i32 : i32
    %1 = arith.addi %0, %arg1 : i32
    %c0_i32 = arith.constant 0 : i32
    return %1, %arg2 : i32, i32
  }
  func.func @transform_2(%arg0: i32, %arg1: i32, %arg2: i32) -> (i32, i32) {
    %c1_i32 = arith.constant 1 : i32
    %0 = arith.muli %arg0, %c1_i32 : i32
    %1 = arith.addi %0, %arg1 : i32
    %c0_i32 = arith.constant 0 : i32
    %c0_i32_0 = arith.constant 0 : i32
    return %1, %c0_i32 : i32, i32
  }
  func.func @transform_3(%arg0: i32, %arg1: i32, %arg2: i32) -> (i32, i32, i32) {
    %c0_i32 = arith.constant 0 : i32
    %c0_i32_0 = arith.constant 0 : i32
    %c0_i32_1 = arith.constant 0 : i32
    return %arg0, %c0_i32, %c0_i32_0 : i32, i32, i32
  }
}

</mosaic_0001>

<llo_original>
// kernel: tpu_custom_call.1
$region0: #{tpu_custom_call.1}
  #allocation0 [shape = 'u32[]', space=smem, size = 0x4, offset = 0x4, fixed_abs, tag = 'smem constant byte address 0x4 - core index']
  #allocation1 [shape = 'u32[144,128]{1,0:T(1,128)}', space=vmem, size = 0x12000, scoped, tag = 'internal scratch']
  #allocation2 [shape = 'f32[8,1]{1,0:T(8,128)}', space=vmem, size = 0x1000, scoped, tag = 'scratch operand']
  #allocation3 [shape = 'f32[8,1]{1,0:T(8,128)}', space=vmem, size = 0x1000, scoped, tag = 'scratch operand']
  #allocation4 [shape = 'f32[8,1]{1,0:T(8,128)}', space=vmem, size = 0x1000, scoped, tag = 'scratch operand']
  #allocation5 [shape = 'f32[8,1]{1,0:T(8,128)}', space=vmem, size = 0x1000, scoped, tag = 'scratch operand']
  #allocation6 [shape = 'f32[8,1]{1,0:T(8,128)}', space=vmem, size = 0x1000, scoped, tag = 'scratch operand']
  %s0 = inlined_call_operand.vmem [shape: f32[8,32], index: 0, kind: input, shape index: {}]
  %s1 = inlined_call_operand.hbm [shape: f32[8,32], index: 1, kind: input, shape index: {}]
  %s2 = inlined_call_operand.vmem [shape: f32[8,1], index: 2, kind: input, shape index: {}]
  %s3 = inlined_call_operand.hbm [shape: f32[1,1,1], index: 3, kind: output, shape index: {}]
  %s4 = sld [smem:[#allocation0]]
  $region38: #{tpu_custom_call.1} parent=0
    _
  %s6 = ssub.s32 1, %s4
  %s7 = scalar_select 0, %s6, %s4
  $region1: #{tpu_custom_call.1} parent=0
    #allocation7 [shape = 'u8[4096]{0}', space=vmem, size = 0x1000, scoped, tag = 'input window, operand 1, single buffered']
    #allocation8 [shape = 's32[1]{0}', space=sflag, size = 0x4, scoped, tag = 'scoped memory for tpu_custom_call.1']
    #allocation9 [shape = 's32[1]{0}', space=sflag, size = 0x4, scoped, tag = 'scoped memory for tpu_custom_call.1']
    #allocation10 [shape = 'u8[512]{0}', space=vmem, size = 0x400, scoped, tag = 'output window, operand 0, single buffered']
    %8 = vsyncpa [#allocation8], 0
    %9 = vsyncpa [#allocation9], 0
    // Predicated region
    $region2: #{tpu_custom_call.1} parent=1 // pred_check
      _
    $region3: #{tpu_custom_call.1} parent=1 // pred_check_branch
      %11 = sbr.rel (0) target = $region5
    $region4: #{tpu_custom_call.1} parent=1 // pred_region
      %s12 = sadd.s32 0, 0
      %p13 = scmp.lt.s32.totalorder %s12, 0
      %s14 = scalar_select %p13, %s12, 0
      %s15 = smul.addr %s14, 8
      %s16 = scalar_lea.vmem %s0, %s15
      %s17 = sadd.s32 0, 0
    $region5: #{tpu_custom_call.1} parent=1 // pred_fallthru
      _
    // Predicated region
    $region6: #{tpu_custom_call.1} parent=1 // pred_check
      _
    $region7: #{tpu_custom_call.1} parent=1 // pred_check_branch
      %19 = sbr.rel (0) target = $region9
    $region8: #{tpu_custom_call.1} parent=1 // pred_region
      %s20 = sadd.s32 0, 0
      %s22 = ssub.s32 128, 128
      %23 = vsyncadd [#allocation8], %s22
      %s24 = smul.addr %s20, 128
      %s25 = scalar_lea.hbm %s1, %s24
      %s27 = sshll.u32 [#allocation7], 4
      %s28 = int_to_ptr.vmem [resolvable:$true] %s27
      %30 = dma.hbm_to_vmem [thread:$0]  %s25, 128, %s28, [#allocation8]
    $region9: #{tpu_custom_call.1} parent=1 // pred_fallthru
      _
    // Predicated region
    $region10: #{tpu_custom_call.1} parent=1 // pred_check
      _
    $region11: #{tpu_custom_call.1} parent=1 // pred_check_branch
      %32 = sbr.rel (0) target = $region13
    $region12: #{tpu_custom_call.1} parent=1 // pred_region
      %s33 = sadd.s32 0, 0
      %p34 = scmp.lt.s32.totalorder %s33, 0
      %s35 = scalar_select %p34, %s33, 0
      %s36 = smul.addr %s35, 8
      %s37 = scalar_lea.vmem %s2, %s36
      %s38 = sadd.s32 0, 0
    $region13: #{tpu_custom_call.1} parent=1 // pred_fallthru
      _
    // Predicated region
    $region14: #{tpu_custom_call.1} parent=1 // pred_check
      _
    $region15: #{tpu_custom_call.1} parent=1 // pred_check_branch
      %40 = sbr.rel (0) target = $region17
    $region16: #{tpu_custom_call.1} parent=1 // pred_region
      %41 = dma.done [#allocation8], 128
    $region17: #{tpu_custom_call.1} parent=1 // pred_fallthru
      _
    %s42 = sadd.s32 0, 0
    %p43 = scmp.lt.s32.totalorder %s42, 0
    %s44 = scalar_select %p43, %s42, 0
    %s45 = smul.addr %s44, 8
    %s46 = scalar_lea.vmem %s0, %s45
    %s47 = sadd.s32 0, 0
    %p48 = scmp.lt.s32.totalorder %s47, 0
    %s49 = scalar_select %p48, %s47, 0
    %s50 = smul.addr %s49, 8
    %s51 = scalar_lea.vmem %s2, %s50
    %s52 = sadd.s32 0, 0
    %p53 = scmp.lt.s32.totalorder %s52, 0
    %s54 = scalar_select %p53, %s52, 0
    %s55 = smul.addr %s54, 8
    %s56 = scalar_lea.vmem %s0, %s55
    %s57 = sadd.s32 0, 0
    %s58 = sadd.s32 0, 0
    %s59 = sadd.s32 0, 0
    %p60 = scmp.lt.s32.totalorder %s59, 0
    %s61 = scalar_select %p60, %s59, 0
    %s62 = smul.addr %s61, 8
    %s63 = scalar_lea.vmem %s2, %s62
    %s64 = sadd.s32 0, 0
    %p65 = scmp.eq.s32.totalorder 0, 0
    %p66 = scmp.eq.s32.totalorder 0, 0
    %p67 = pnand %p65, %p66
    %p68 = pneg %p67
    // Predicated region
    $region18: #{tpu_custom_call.1} parent=1 // pred_check
      _
    $region19: #{tpu_custom_call.1} parent=1 // pred_check_branch
      %70 = sbr.rel (%p67) target = $region21
    $region20: #{tpu_custom_call.1} parent=1 // pred_region
      %vm71 = vcmask 0
      %72 = vst.msk [vmem:[#allocation10] sm:$0x1] %vm71, 0.0
    $region21: #{tpu_custom_call.1} parent=1 // pred_fallthru
      _
    // Predicated region
    $region22: #{tpu_custom_call.1} parent=1 // pred_check
      %p73 = pneg %p66
    $region23: #{tpu_custom_call.1} parent=1 // pred_check_branch
      %75 = sbr.rel (%p73) target = $region25
    $region24: #{tpu_custom_call.1} parent=1 // pred_region
      %vm76 = vcmask 7168
      %77 = vst.msk [vmem:[#allocation2] sm:$0xff] %vm76, 0.0
      %78 = vst.msk [vmem:[#allocation3] sm:$0xff] %vm76, 0.0
      %79 = vst.msk [vmem:[#allocation4] sm:$0xff] %vm76, 0.0
      %80 = vst.msk [vmem:[#allocation5] sm:$0xff] %vm76, 0.0
      %81 = vst.msk [vmem:[#allocation6] sm:$0xff] %vm76, 0.0
    $region25: #{tpu_custom_call.1} parent=1 // pred_fallthru
      _
    %v82 = vld [vmem:[%s56] sm:$0xff]
    %v83 = vld [vmem:[#allocation7] sm:$0xff]
    %v84 = vld [vmem:[#allocation2] sm:$0xff]
    %v85 = vmul.f32 %v82, %v82
    %vm86 = vcmask 261120
    %v87 = vsel %vm86, %v85, 0.0
    %88 = vadd.xlane.f32.xlu0 %v87
    %v89 = vpop.xlane.xlu0 %88
    %v90 = vadd.f32 %v84, %v89
    %vm91 = vcmask 7168
    %92 = vst.msk [vmem:[#allocation2] sm:$0xff] %vm91, %v90
    %v93 = vld [vmem:[#allocation3] sm:$0xff]
    %v94 = vmul.f32 %v83, %v83
    %v95 = vsel %vm86, %v94, 0.0
    %96 = vadd.xlane.f32.xlu0 %v95
    %v97 = vpop.xlane.xlu0 %96
    %v98 = vadd.f32 %v93, %v97
    %99 = vst.msk [vmem:[#allocation3] sm:$0xff] %vm91, %v98
    %v100 = vld [vmem:[#allocation4] sm:$0xff]
    %v101 = vmul.f32 %v82, %v83
    %v102 = vsel %vm86, %v101, 0.0
    %103 = vadd.xlane.f32.xlu0 %v102
    %v104 = vpop.xlane.xlu0 %103
    %v105 = vadd.f32 %v100, %v104
    %106 = vst.msk [vmem:[#allocation4] sm:$0xff] %vm91, %v105
    %v107 = vld [vmem:[#allocation5] sm:$0xff]
    %v108 = vsel %vm86, %v82, 0.0
    %109 = vadd.xlane.f32.xlu0 %v108
    %v110 = vpop.xlane.xlu0 %109
    %v111 = vadd.f32 %v107, %v110
    %112 = vst.msk [vmem:[#allocation5] sm:$0xff] %vm91, %v111
    %v113 = vld [vmem:[#allocation6] sm:$0xff]
    %v114 = vsel %vm86, %v83, 0.0
    %115 = vadd.xlane.f32.xlu0 %v114
    %v116 = vpop.xlane.xlu0 %115
    %v117 = vadd.f32 %v113, %v116
    %118 = vst.msk [vmem:[#allocation6] sm:$0xff] %vm91, %v117
    // Predicated region
    $region26: #{tpu_custom_call.1} parent=1 // pred_check
      %p119 = pneg %p66
    $region27: #{tpu_custom_call.1} parent=1 // pred_check_branch
      %121 = sbr.rel (%p119) target = $region29
    $region28: #{tpu_custom_call.1} parent=1 // pred_region
      %v122 = vld [vmem:[#allocation2] sm:$0xff]
      %v123 = vld [vmem:[#allocation3] sm:$0xff]
      %v124 = vmax.f32 %v122, 1e-24
      %v125 = vrsqrt.pop %v124
      %v126 = vmax.f32 %v123, 1e-24
      %v127 = vrsqrt.pop %v126
      %v128 = vmul.f32 %v125, %v125
      %v129 = vmul.f32 %v122, %v128
      %v130 = vmul.f32 %v127, %v127
      %v131 = vmul.f32 %v123, %v130
      %v132 = vadd.f32 %v129, %v131
      %v133 = vld [vmem:[#allocation4] sm:$0xff]
      %v134 = vmul.f32 %v125, %v127
      %v135 = vmul.f32 %v133, %v134
      %v136 = vmul.f32 %v135, 2.0
      %v137 = vsub.f32 %v132, %v136
      %v138 = vld [vmem:[#allocation5] sm:$0xff]
      %v139 = vmul.f32 %v138, %v125
      %v140 = vld [vmem:[#allocation6] sm:$0xff]
      %v141 = vmul.f32 %v140, %v127
      %v142 = vsub.f32 %v139, %v141
      %v143 = vmul.f32 %v142, 2e-06
      %v144 = vadd.f32 %v137, %v143
      %v145 = vadd.f32 %v144, 3.2e-11
      %v146 = vmax.f32 %v145, 0.0
      %v147 = vrsqrt.pop %v146
      %v148 = vmul.f32 %v146, %v147
      %vm149 = vcmp.eq.f32.partialorder %v146, inf
      %v150 = vsel %vm149, %v146, %v148
      %vm151 = vcmp.eq.f32.partialorder %v146, 0.0
      %v152 = vand.u32 %v146, 2147483648
      %v153 = vsel %vm151, %v152, %v150
      %v154 = vld [vmem:[%s63] sm:$0xff]
      %v155 = vsub.f32 1.0, %v153
      %v156 = vmax.f32 %v155, 0.0
      %v157 = vsub.f32 1.0, %v154
      %v158 = vmul.f32 %v157, %v146
      %v159 = vmul.f32 %v156, %v156
      %v160 = vmul.f32 %v154, %v159
      %v161 = vadd.f32 %v158, %v160
      %v162 = vld [vmem:[#allocation10] sm:$0x1]
      %v163 = vsel %vm91, %v161, 0.0
      %164 = vadd.xlane.f32.xlu0 %v163
      %v165 = vpop.xlane.xlu0 %164
      %v166 = vrot.slane %v165, 4
      %v167 = vadd.f32 %v165, %v166
      %v168 = vrot.slane %v167, 2
      %v169 = vadd.f32 %v167, %v168
      %v170 = vrot.slane %v169, 1
      %v171 = vadd.f32 %v169, %v170
      %s172 = vtos %v171
      %v173 = vstv %s172
      %v174 = vadd.f32 %v162, %v173
      %vm175 = vcmask 0
      %176 = vst.msk [vmem:[#allocation10] sm:$0x1] %vm175, %v174
    $region29: #{tpu_custom_call.1} parent=1 // pred_fallthru
      _
    // Predicated region
    $region30: #{tpu_custom_call.1} parent=1 // pred_check
      _
    $region31: #{tpu_custom_call.1} parent=1 // pred_check_branch
      %178 = sbr.rel (0) target = $region33
    $region32: #{tpu_custom_call.1} parent=1 // pred_region
      %s180 = ssub.s32 16, 16
      %181 = vsyncadd [#allocation9], %s180
      %s183 = sshll.u32 [#allocation10], 4
      %s184 = int_to_ptr.vmem [resolvable:$true] %s183
      %186 = dma.vmem_to_hbm [thread:$0]  %s184, 16, %s3, [#allocation9]
    $region33: #{tpu_custom_call.1} parent=1 // pred_fallthru
      _
    // Predicated region
    $region34: #{tpu_custom_call.1} parent=1 // pred_check
      _
    $region35: #{tpu_custom_call.1} parent=1 // pred_check_branch
      %188 = sbr.rel (0) target = $region37
    $region36: #{tpu_custom_call.1} parent=1 // pred_region
      %189 = dma.done [#allocation9], 16
    $region37: #{tpu_custom_call.1} parent=1 // pred_fallthru
      _
    %190 = vsyncpa [#allocation8], 1
    %191 = vsyncpa [#allocation9], 1

</llo_original>
